<compile_context>
chip_gen: v5e
topology: v5e:2x2
jax: 0.10.0
libtpu: 0.0.40
codegen_flags: <defaults>
</compile_context>

<pallas_src>
import jax
import jax.numpy as jnp
from jax.experimental import pallas as pl
from jax.experimental.pallas import tpu as pltpu


# ----------------------------------------------------------------------------
# Enums mirroring the TFT-style DataTypes / InputTypes used by the module.
# ----------------------------------------------------------------------------
class DataTypes:
    REAL_VALUED = 0
    CATEGORICAL = 1


class InputTypes:
    TARGET = 0
    OBSERVED_INPUT = 1
    KNOWN_INPUT = 2
    STATIC_INPUT = 4


_LANE = 128          # vreg lane width: identical on v5e / v6e / v7x
# Resident-table gate: packed table (<=2 MiB) + double-buffered row/out blocks
# stays well under v5e's 16 MiB default scoped VMEM and v7x's 64 MiB physical.
_RESIDENT_TABLE_MAX_BYTES = 2 * 1024 * 1024
_LINEAR_TILE_ROWS = 512      # fused rows / step -> 256 KB f32 output block
_GATHER_TILE_ROWS = 256      # fused rows / step -> 128 KB f32 output block


def _round_up(a, b):
    return ((a + b - 1) // b) * b


def _fold_factor(emb_dim):
    """How many logical rows get packed into one 128-lane output row."""
    if emb_dim < _LANE and _LANE % emb_dim == 0:
        return _LANE // emb_dim
    return 1


# ----------------------------------------------------------------------------
# Kernel 1: nn.Linear(1, D)  (REAL_VALUED path), lane-fused.
#   x2:   (TILE, R)   f32   -- R consecutive scalar inputs per fused row
#   emb:  (R, L=R*D)  f32   -- block-diagonal placement of W^T (row r holds w
#                              in columns [r*D, (r+1)*D), zeros elsewhere)
#   bias: (1, L)      f32   -- bias tiled R times
#   out:  (TILE, L)         -- out2[i, r*D+d] = x2[i,r]*w[d] + b[d]
# Pure VPU broadcast-multiply-adds (exact f32, no MXU precision concerns).
# ----------------------------------------------------------------------------
def _linear_fused_kernel(x_ref, e_ref, b_ref, o_ref):
    r_fold = x_ref.shape[1]
    acc = jnp.zeros(o_ref.shape, jnp.float32)
    for r in range(r_fold):  # static, small (<= 128, typically 4)
        acc = acc + x_ref[:, r:r + 1].astype(jnp.float32) * e_ref[r:r + 1, :]
    o_ref[...] = (acc + b_ref[...]).astype(o_ref.dtype)


def linear1_embed(x_flat, emb_mat, bias_row):
    """x_flat: (N,) f32; emb_mat: (R, L); bias_row: (1, L). Returns (N, D)."""
    n = x_flat.shape[0]
    r_fold, lanes = emb_mat.shape
    d = lanes // r_fold
    n2 = -(-n // r_fold)                               # fused row count
    tile = min(_LINEAR_TILE_ROWS, _round_up(max(n2, 1), 8))
    n2_pad = _round_up(n2, tile)
    x2 = jnp.pad(x_flat.astype(jnp.float32),
                 (0, n2_pad * r_fold - n)).reshape(n2_pad, r_fold)
    out2 = pl.pallas_call(
        _linear_fused_kernel,
        out_shape=jax.ShapeDtypeStruct((n2_pad, lanes), jnp.float32),
        grid_spec=pl.GridSpec(
            grid=(n2_pad // tile,),
            in_specs=[
                pl.BlockSpec((tile, r_fold), lambda i: (i, 0)),
                pl.BlockSpec((r_fold, lanes), lambda i: (0, 0)),
                pl.BlockSpec((1, lanes), lambda i: (0, 0)),
            ],
            out_specs=pl.BlockSpec((tile, lanes), lambda i: (i, 0)),
        ),
        compiler_params=pltpu.CompilerParams(
            dimension_semantics=("parallel",)),
    )(x2, emb_mat, bias_row)
    # (n2_pad, R*D) -> (n2_pad*R, D) is a free row-major reshape.
    return out2.reshape(n2_pad * r_fold, d)[:n]


# ----------------------------------------------------------------------------
# Kernel 2a: nn.Embedding(V, D), small vocab: VMEM-resident packed table,
# batched one-hot @ table on the MXU, lane-dense (TILE, 128) output.
#   idx2: (TILE, R) int32
#   tab:  (K = R*V_pad, L = R*D) f32, block-diagonal copies of the table
# ----------------------------------------------------------------------------
def _onehot_gather_kernel(idx_ref, tab_ref, o_ref):
    tile, r_fold = idx_ref.shape
    k = tab_ref.shape[0]
    v_pad = k // r_fold
    col = jax.lax.broadcasted_iota(jnp.int32, (tile, k), 1)
    onehot = jnp.zeros((tile, k), jnp.float32)
    for r in range(r_fold):  # static, small
        onehot = onehot + (col == (idx_ref[:, r:r + 1] + r * v_pad)).astype(
            jnp.float32)
    o_ref[...] = jnp.dot(
        onehot, tab_ref[...],
        preferred_element_type=jnp.float32,
        precision=jax.lax.Precision.HIGHEST).astype(o_ref.dtype)


def embedding_lookup_resident(indices_flat, packed_table, r_fold, vocab):
    """indices_flat: (N,) int; packed_table: (R*V_pad, R*D). Returns (N, D)."""
    n = indices_flat.shape[0]
    k, lanes = packed_table.shape
    d = lanes // r_fold
    idx = jnp.clip(indices_flat.astype(jnp.int32), 0, vocab - 1)
    n2 = -(-n // r_fold)
    tile = min(_GATHER_TILE_ROWS, _round_up(max(n2, 1), 8))
    n2_pad = _round_up(n2, tile)
    idx2 = jnp.pad(idx, (0, n2_pad * r_fold - n)).reshape(n2_pad, r_fold)
    out2 = pl.pallas_call(
        _onehot_gather_kernel,
        out_shape=jax.ShapeDtypeStruct((n2_pad, lanes), jnp.float32),
        grid_spec=pl.GridSpec(
            grid=(n2_pad // tile,),
            in_specs=[
                pl.BlockSpec((tile, r_fold), lambda i: (i, 0)),
                pl.BlockSpec((k, lanes), lambda i: (0, 0)),   # resident table
            ],
            out_specs=pl.BlockSpec((tile, lanes), lambda i: (i, 0)),
        ),
        compiler_params=pltpu.CompilerParams(
            dimension_semantics=("parallel",)),
    )(idx2, packed_table)
    return out2.reshape(n2_pad * r_fold, d)[:n]


# ----------------------------------------------------------------------------
# Kernel 2b: large-vocab fallback — scalar-prefetched indices drive the table
# BlockSpec index_map (per-row DMA gather).  Exact; only used when the packed
# resident table would exceed the VMEM budget.
# ----------------------------------------------------------------------------
def _row_gather_kernel(idx_ref, row_ref, o_ref):
    del idx_ref
    o_ref[...] = row_ref[...]


def embedding_lookup_rowgather(indices_flat, table):
    """indices_flat: (N,) int (pre-clamped); table: (V, D). Returns (N, D)."""
    n = indices_flat.shape[0]
    _, d = table.shape
    return pl.pallas_call(
        _row_gather_kernel,
        out_shape=jax.ShapeDtypeStruct((n, d), table.dtype),
        grid_spec=pltpu.PrefetchScalarGridSpec(
            num_scalar_prefetch=1,
            grid=(n,),
            in_specs=[pl.BlockSpec((1, d), lambda i, idx: (idx[i], 0))],
            out_specs=pl.BlockSpec((1, d), lambda i, idx: (i, 0)),
        ),
        compiler_params=pltpu.CompilerParams(
            dimension_semantics=("parallel",)),
    )(indices_flat.astype(jnp.int32), table)


# ----------------------------------------------------------------------------
# Python wrapper mirroring build_embeddings.forward
# ----------------------------------------------------------------------------
class BuildEmbeddings:
    # col_tup = (name, data_type, input_type, embedding_dim, num_embeddings)

    def __init__(self, params, col_tup, key):
        self.params = params
        self.col_tup = col_tup
        self._column_definition = params['column_definition']
        if self.col_tup not in self._column_definition:
            raise ValueError(f'feature {self.col_tup[0]} is not in feature list.')

        d = col_tup[3]
        r_fold = _fold_factor(d)
        self.emb_dim = d
        self.r_fold = r_fold

        if col_tup[1] == DataTypes.REAL_VALUED:
            # nn.Linear(1, D) default init: U(-1/sqrt(fan_in), 1/sqrt(fan_in)), fan_in=1
            k1, k2 = jax.random.split(key)
            self.weight = jax.random.uniform(k1, (d, 1), jnp.float32, -1.0, 1.0)
            self.bias = jax.random.uniform(k2, (d,), jnp.float32, -1.0, 1.0)
            w_row = self.weight.reshape(d)
            emb = jnp.zeros((r_fold, r_fold * d), jnp.float32)
            for r in range(r_fold):
                emb = emb.at[r, r * d:(r + 1) * d].set(w_row)
            self.emb_mat = emb                                   # (R, R*D)
            self.bias_row = jnp.tile(self.bias, r_fold).reshape(1, r_fold * d)
        else:
            # nn.Embedding default init: N(0, 1)
            vocab = col_tup[-1]
            self.num_emb = vocab
            self.table = jax.random.normal(key, (vocab, d), jnp.float32)
            v_pad = _round_up(vocab, 8)
            packed_bytes = (r_fold * v_pad) * (r_fold * d) * 4
            self.use_resident = packed_bytes <= _RESIDENT_TABLE_MAX_BYTES
            if self.use_resident:
                packed = jnp.zeros((r_fold * v_pad, r_fold * d), jnp.float32)
                for r in range(r_fold):
                    packed = packed.at[r * v_pad:r * v_pad + vocab,
                                       r * d:(r + 1) * d].set(self.table)
                self.packed_table = packed

    def __call__(self, inputs):
        dtype_kind, input_kind, d = self.col_tup[1], self.col_tup[2], self.col_tup[3]

        if dtype_kind == DataTypes.REAL_VALUED and input_kind != InputTypes.STATIC_INPUT:
            # REAL_VALUED, time-varying: Linear(1, D) then unsqueeze(-2)
            x = inputs.reshape(-1).astype(jnp.float32)
            out = linear1_embed(x, self.emb_mat, self.bias_row)
            out = out.reshape(inputs.shape[:-1] + (d,))
            return jnp.expand_dims(out, -2)

        # CATEGORICAL (incl. static): embedding row gather
        idx = inputs.astype(jnp.int32).reshape(-1)
        if self.use_resident:
            out = embedding_lookup_resident(idx, self.packed_table,
                                            self.r_fold, self.num_emb)
        else:
            idx = jnp.clip(idx, 0, self.num_emb - 1)
            out = embedding_lookup_rowgather(idx, self.table)
        return out.reshape(inputs.shape + (d,))


# ----------------------------------------------------------------------------
# Demo / self-check
# ----------------------------------------------------------------------------
if __name__ == "__main__":
    B, T, D = 2, 8, 32
    V = 10          # small categorical vocabulary -> resident one-hot MXU path
    V_BIG = 4096    # large vocabulary -> row-gather fallback path

    real_col = ("price", DataTypes.REAL_VALUED, InputTypes.OBSERVED_INPUT, D, 1)
    cat_col = ("store_id", DataTypes.CATEGORICAL, InputTypes.KNOWN_INPUT, D, V)
    static_col = ("region", DataTypes.CATEGORICAL, InputTypes.STATIC_INPUT, D, V)
    big_col = ("item_id", DataTypes.CATEGORICAL, InputTypes.KNOWN_INPUT, D, V_BIG)
    params = {"column_definition": [real_col, cat_col, static_col, big_col]}

    key = jax.random.PRNGKey(0)
    (k_real, k_cat, k_static, k_big,
     k_x, k_idx, k_sidx, k_bidx) = jax.random.split(key, 8)

    emb_real = BuildEmbeddings(params, real_col, k_real)
    emb_cat = BuildEmbeddings(params, cat_col, k_cat)
    emb_static = BuildEmbeddings(params, static_col, k_static)
    emb_big = BuildEmbeddings(params, big_col, k_big)

    x_real = jax.random.normal(k_x, (B, T, 1), jnp.float32)            # [B, T, 1]
    x_cat = jax.random.randint(k_idx, (B, T), 0, V, jnp.int32)         # [B, T]
    x_static = jax.random.randint(k_sidx, (B,), 0, V, jnp.int32)       # [B]
    x_big = jax.random.randint(k_bidx, (B, T), 0, V_BIG, jnp.int32)    # [B, T]

    y_real = jax.block_until_ready(emb_real(x_real))        # [B, T, 1, D]
    y_cat = jax.block_until_ready(emb_cat(x_cat))           # [B, T, D]
    y_static = jax.block_until_ready(emb_static(x_static))  # [B, D]
    y_big = jax.block_until_ready(emb_big(x_big))           # [B, T, D]

    # Pure-JAX references (exact elementwise / gather)
    ref_real = jnp.expand_dims(
        x_real * emb_real.weight.reshape(-1) + emb_real.bias, -2)
    ref_cat = emb_cat.table[x_cat]
    ref_static = emb_static.table[x_static]
    ref_big = emb_big.table[x_big]

    assert y_real.shape == (B, T, 1, D)
    assert y_cat.shape == (B, T, D)
    assert y_static.shape == (B, D)
    assert y_big.shape == (B, T, D)
    assert jnp.allclose(y_real, ref_real, rtol=1e-6, atol=1e-6)
    assert jnp.allclose(y_cat, ref_cat, rtol=1e-5, atol=1e-5)
    assert jnp.allclose(y_static, ref_static, rtol=1e-5, atol=1e-5)
    assert jnp.allclose(y_big, ref_big)

    print("KERNEL_OK")
</pallas_src>

<mosaic_0001>
module attributes {stable_mosaic.version = 11 : i64} {
  func.func @_linear_fused_kernel(%arg0: i32, %arg1: memref<8x4xf32, #tpu.memory_space<vmem>>, %arg2: memref<4x128xf32, #tpu.memory_space<vmem>>, %arg3: memref<1x128xf32, #tpu.memory_space<vmem>>, %arg4: memref<8x128xf32, #tpu.memory_space<vmem>>) attributes {dimension_semantics = [#tpu.dimension_semantics<parallel>], iteration_bounds = array<i64: 1>, scalar_prefetch = 0 : i64, scratch_operands = 0 : i64, tpu.core_type = #tpu.core_type<tc>, window_params = [{transform_indices = @transform_0, window_bounds = array<i64: 8, 4>}, {pipeline_mode = #tpu.pipeline_mode<synchronous>, transform_indices = @transform_1, window_bounds = array<i64: 4, 128>}, {pipeline_mode = #tpu.pipeline_mode<synchronous>, transform_indices = @transform_2, window_bounds = array<i64: 1, 128>}, {transform_indices = @transform_3, window_bounds = array<i64: 8, 128>}]} {
    %cst = arith.constant 0.000000e+00 : f32
    %0 = vector.broadcast %cst : f32 to vector<8x128xf32>
    %c0 = arith.constant 0 : index
    %c0_0 = arith.constant 0 : index
    %1 = vector.load %arg1[%c0, %c0_0] : memref<8x4xf32, #tpu.memory_space<vmem>>, vector<8x1xf32>
    %c0_1 = arith.constant 0 : index
    %c0_2 = arith.constant 0 : index
    %2 = vector.load %arg2[%c0_1, %c0_2] : memref<4x128xf32, #tpu.memory_space<vmem>>, vector<1x128xf32>
    %3 = vector.broadcast %1 : vector<8x1xf32> to vector<8x128xf32>
    %4 = vector.broadcast %2 : vector<1x128xf32> to vector<8x128xf32>
    %5 = arith.mulf %3, %4 : vector<8x128xf32>
    %6 = arith.addf %0, %5 : vector<8x128xf32>
    %c0_3 = arith.constant 0 : index
    %c1 = arith.constant 1 : index
    %7 = vector.load %arg1[%c0_3, %c1] : memref<8x4xf32, #tpu.memory_space<vmem>>, vector<8x1xf32>
    %c1_4 = arith.constant 1 : index
    %c0_5 = arith.constant 0 : index
    %8 = vector.load %arg2[%c1_4, %c0_5] : memref<4x128xf32, #tpu.memory_space<vmem>>, vector<1x128xf32>
    %9 = vector.broadcast %7 : vector<8x1xf32> to vector<8x128xf32>
    %10 = vector.broadcast %8 : vector<1x128xf32> to vector<8x128xf32>
    %11 = arith.mulf %9, %10 : vector<8x128xf32>
    %12 = arith.addf %6, %11 : vector<8x128xf32>
    %c0_6 = arith.constant 0 : index
    %c2 = arith.constant 2 : index
    %13 = vector.load %arg1[%c0_6, %c2] : memref<8x4xf32, #tpu.memory_space<vmem>>, vector<8x1xf32>
    %c2_7 = arith.constant 2 : index
    %c0_8 = arith.constant 0 : index
    %14 = vector.load %arg2[%c2_7, %c0_8] : memref<4x128xf32, #tpu.memory_space<vmem>>, vector<1x128xf32>
    %15 = vector.broadcast %13 : vector<8x1xf32> to vector<8x128xf32>
    %16 = vector.broadcast %14 : vector<1x128xf32> to vector<8x128xf32>
    %17 = arith.mulf %15, %16 : vector<8x128xf32>
    %18 = arith.addf %12, %17 : vector<8x128xf32>
    %c0_9 = arith.constant 0 : index
    %c3 = arith.constant 3 : index
    %19 = vector.load %arg1[%c0_9, %c3] : memref<8x4xf32, #tpu.memory_space<vmem>>, vector<8x1xf32>
    %c3_10 = arith.constant 3 : index
    %c0_11 = arith.constant 0 : index
    %20 = vector.load %arg2[%c3_10, %c0_11] : memref<4x128xf32, #tpu.memory_space<vmem>>, vector<1x128xf32>
    %21 = vector.broadcast %19 : vector<8x1xf32> to vector<8x128xf32>
    %22 = vector.broadcast %20 : vector<1x128xf32> to vector<8x128xf32>
    %23 = arith.mulf %21, %22 : vector<8x128xf32>
    %24 = arith.addf %18, %23 : vector<8x128xf32>
    %c0_12 = arith.constant 0 : index
    %c0_13 = arith.constant 0 : index
    %25 = vector.load %arg3[%c0_12, %c0_13] : memref<1x128xf32, #tpu.memory_space<vmem>>, vector<1x128xf32>
    %26 = vector.broadcast %25 : vector<1x128xf32> to vector<8x128xf32>
    %27 = arith.addf %24, %26 : vector<8x128xf32>
    %c0_14 = arith.constant 0 : index
    %c0_15 = arith.constant 0 : index
    %28 = vector.load %arg4[%c0_14, %c0_15] : memref<8x128xf32, #tpu.memory_space<vmem>>, vector<8x128xf32>
    tpu.vector_store %arg4[%c0_14, %c0_15], %27 {strides = array<i32>} : memref<8x128xf32, #tpu.memory_space<vmem>>, vector<8x128xf32>,
    return
  }
  func.func @transform_0(%arg0: i32) -> (i32, i32) {
    %c0_i32 = arith.constant 0 : i32
    %c0_i32_0 = arith.constant 0 : i32
    return %arg0, %c0_i32 : i32, i32
  }
  func.func @transform_1(%arg0: i32) -> (i32, i32) {
    %c0_i32 = arith.constant 0 : i32
    %c0_i32_0 = arith.constant 0 : i32
    %c0_i32_1 = arith.constant 0 : i32
    return %c0_i32, %c0_i32_0 : i32, i32
  }
  func.func @transform_2(%arg0: i32) -> (i32, i32) {
    %c0_i32 = arith.constant 0 : i32
    %c0_i32_0 = arith.constant 0 : i32
    %c0_i32_1 = arith.constant 0 : i32
    return %c0_i32, %c0_i32_0 : i32, i32
  }
  func.func @transform_3(%arg0: i32) -> (i32, i32) {
    %c0_i32 = arith.constant 0 : i32
    %c0_i32_0 = arith.constant 0 : i32
    return %arg0, %c0_i32 : i32, i32
  }
}

</mosaic_0001>

<llo_original>
// kernel: tpu_custom_call.1
$region0: #{tpu_custom_call.1}
  #allocation0 [shape = 'u32[]', space=smem, size = 0x4, offset = 0x4, fixed_abs, tag = 'smem constant byte address 0x4 - core index']
  #allocation1 [shape = 'u32[72,128]{1,0:T(1,128)}', space=vmem, size = 0x9000, scoped, tag = 'internal scratch']
  %s0 = inlined_call_operand.vmem [shape: f32[8,4], index: 0, kind: input, shape index: {}]
  %s1 = inlined_call_operand.vmem [shape: f32[4,128], index: 1, kind: input, shape index: {}]
  %s2 = inlined_call_operand.vmem [shape: f32[1,128], index: 2, kind: input, shape index: {}]
  %s3 = inlined_call_operand.hbm [shape: f32[8,128], index: 3, kind: output, shape index: {}]
  %s4 = sld [smem:[#allocation0]]
  $region22: #{tpu_custom_call.1} parent=0
    _
  %s6 = ssub.s32 1, %s4
  %s7 = scalar_select 0, %s6, %s4
  $region1: #{tpu_custom_call.1} parent=0
    #allocation2 [shape = 'u8[4096]{0}', space=vmem, size = 0x1000, scoped, tag = 'output window, operand 0, single buffered']
    #allocation3 [shape = 's32[1]{0}', space=sflag, size = 0x4, scoped, tag = 'scoped memory for tpu_custom_call.1']
    %8 = vsyncpa [#allocation3], 0
    // Predicated region
    $region2: #{tpu_custom_call.1} parent=1 // pred_check
      _
    $region3: #{tpu_custom_call.1} parent=1 // pred_check_branch
      %10 = sbr.rel (0) target = $region5
    $region4: #{tpu_custom_call.1} parent=1 // pred_region
      _
    $region5: #{tpu_custom_call.1} parent=1 // pred_fallthru
      _
    // Predicated region
    $region6: #{tpu_custom_call.1} parent=1 // pred_check
      _
    $region7: #{tpu_custom_call.1} parent=1 // pred_check_branch
      %12 = sbr.rel (0) target = $region9
    $region8: #{tpu_custom_call.1} parent=1 // pred_region
      _
    $region9: #{tpu_custom_call.1} parent=1 // pred_fallthru
      _
    // Predicated region
    $region10: #{tpu_custom_call.1} parent=1 // pred_check
      _
    $region11: #{tpu_custom_call.1} parent=1 // pred_check_branch
      %14 = sbr.rel (0) target = $region13
    $region12: #{tpu_custom_call.1} parent=1 // pred_region
      _
    $region13: #{tpu_custom_call.1} parent=1 // pred_fallthru
      _
    %v15 = vld [vmem:[%s0] sm:$0xff]
    %v16 = vld [vmem:[%s1] sm:$0x1]
    %18 = vset.pattern.permute.xlu0 0
    %19 = vperm.xlu0 %18, %v15
    %v20 = vpop.permute.xlu0 %19
    %v22 = vperm.slane %v16, 0
    %v23 = vmul.f32 %v20, %v22
    %v24 = vadd.f32 %v23, 0.0
    %v25 = vld [vmem:[%s1 + $0x1] sm:$0x1]
    %26 = vset.pattern.permute.xlu0 1
    %27 = vperm.xlu0 %26, %v15
    %v28 = vpop.permute.xlu0 %27
    %v30 = vperm.slane %v25, 0
    %v31 = vmul.f32 %v28, %v30
    %v32 = vadd.f32 %v24, %v31
    %v33 = vld [vmem:[%s1 + $0x2] sm:$0x1]
    %34 = vset.pattern.permute.xlu0 2
    %35 = vperm.xlu0 %34, %v15
    %v36 = vpop.permute.xlu0 %35
    %v38 = vperm.slane %v33, 0
    %v39 = vmul.f32 %v36, %v38
    %v40 = vadd.f32 %v32, %v39
    %v41 = vld [vmem:[%s1 + $0x3] sm:$0x1]
    %42 = vset.pattern.permute.xlu0 3
    %43 = vperm.xlu0 %42, %v15
    %v44 = vpop.permute.xlu0 %43
    %v46 = vperm.slane %v41, 0
    %v47 = vmul.f32 %v44, %v46
    %v48 = vadd.f32 %v40, %v47
    %v49 = vld [vmem:[%s2] sm:$0x1]
    %v51 = vperm.slane %v49, 0
    %v53 = vadd.f32 %v48, %v51
    %54 = vst [vmem:[#allocation2] sm:$0xff] %v53
    // Predicated region
    $region14: #{tpu_custom_call.1} parent=1 // pred_check
      _
    $region15: #{tpu_custom_call.1} parent=1 // pred_check_branch
      %56 = sbr.rel (0) target = $region17
    $region16: #{tpu_custom_call.1} parent=1 // pred_region
      %58 = vsyncadd [#allocation3], 0
      %s60 = sshll.u32 [#allocation2], 4
      %s61 = int_to_ptr.vmem [resolvable:$true] %s60
      %s62 = sshll.u32 %s3, 4
      %s63 = int_to_ptr.hbm [resolvable:$true] %s62
      %65 = dma.vmem_to_hbm [thread:$0]  %s61, 128, %s63, [#allocation3]
    $region17: #{tpu_custom_call.1} parent=1 // pred_fallthru
      _
    // Predicated region
    $region18: #{tpu_custom_call.1} parent=1 // pred_check
      _
    $region19: #{tpu_custom_call.1} parent=1 // pred_check_branch
      %67 = sbr.rel (0) target = $region21
    $region20: #{tpu_custom_call.1} parent=1 // pred_region
      %69 = dma.done [#allocation3], 128
    $region21: #{tpu_custom_call.1} parent=1 // pred_fallthru
      _
    %70 = vsyncpa [#allocation3], 1

</llo_original>
